<compile_context>
chip_gen: v5e
topology: v5e:2x2
jax: 0.10.0
libtpu: 0.0.40
codegen_flags: <defaults>
</compile_context>

<pallas_src>
import math

import jax
import jax.numpy as jnp
from jax import lax
from jax.experimental import pallas as pl
from jax.experimental.pallas import tpu as pltpu


def _nn_dot(a, b):
    """(T, C) @ (C, O) -> (T, O), f32 accumulation on the MXU."""
    return jnp.dot(a, b, preferred_element_type=jnp.float32)


def _nt_dot(a, b):
    """(O, C) x (T, C) -> (O, T): contract last dims of both (q @ k.T form)."""
    return lax.dot_general(a, b, (((1,), (1,)), ((), ())),
                           preferred_element_type=jnp.float32)


def _make_down_kernel(tb, l_half, fuse_pool, squeeze_batch):
    """Kernel: MaxPool1d(2) + (conv3 BN ReLU) x2 for `tb` batch elements.

    Refs (channels-last input, NCL output):
      x_ref  : (L, Cin) or (Lh, Cin)  [leading (tb,) dim if not squeezed]
      w1_ref : (3, Cin, Cmid)   BN1-folded conv1 taps   (y1 = hp_k @ w1[k])
      w2_ref : (3, Cout, Cmid)  BN2-folded conv2 taps   (y2 = w2[k] (.) h1p_k)
      b1_ref : (1, Cmid)        folded bias 1
      b2_ref : (Cout, 1)        folded bias 2
      out_ref: (Cout, Lh)       [leading (tb,) dim if not squeezed] -- NCL,
                                lane-dense along Lh.
    """

    def kernel(x_ref, w1_ref, w2_ref, b1_ref, b2_ref, out_ref):
        w1 = [w1_ref[k] for k in range(3)]        # each (Cin, Cmid)
        w2 = [w2_ref[k] for k in range(3)]        # each (Cout, Cmid)
        b1 = b1_ref[...]                          # (1, Cmid)  bcast over rows
        b2 = b2_ref[...]                          # (Cout, 1)  bcast over lanes

        def compute(pooled):
            # pooled: (Lh, Cin) channels-last.
            cin = pooled.shape[1]
            z1 = jnp.zeros((1, cin), jnp.float32)
            hp = jnp.concatenate([z1, pooled, z1], axis=0)        # (Lh+2, Cin)
            # Conv1 + BN1 (folded) + ReLU: three per-tap matmuls.
            y1 = (_nn_dot(hp[0:l_half, :], w1[0]) +
                  _nn_dot(hp[1:l_half + 1, :], w1[1]) +
                  _nn_dot(hp[2:l_half + 2, :], w1[2]) + b1)
            h1 = jnp.maximum(y1, 0.0)                             # (Lh, Cmid)
            cmid = h1.shape[1]
            z2 = jnp.zeros((1, cmid), jnp.float32)
            h1p = jnp.concatenate([z2, h1, z2], axis=0)           # (Lh+2, Cmid)
            # Conv2 + BN2 (folded) + ReLU. Contract channels of both operands so
            # the result lands channels-first (Cout, Lh): lane-dense store, NCL.
            y2 = (_nt_dot(w2[0], h1p[0:l_half, :]) +
                  _nt_dot(w2[1], h1p[1:l_half + 1, :]) +
                  _nt_dot(w2[2], h1p[2:l_half + 2, :]) + b2)
            return jnp.maximum(y2, 0.0)                           # (Cout, Lh)

        def pooled_of(xr):
            if fuse_pool:
                # MaxPool1d(kernel=2, stride=2): two sublane-strided reads + max.
                even = xr[pl.ds(0, l_half, stride=2), :]
                odd = xr[pl.ds(1, l_half, stride=2), :]
                return jnp.maximum(even, odd)
            return xr[...]                                        # pre-pooled

        if squeeze_batch:
            out_ref[...] = compute(pooled_of(x_ref)).astype(out_ref.dtype)
        else:
            for bb in range(tb):   # static unroll over the per-step batch block
                out_ref[bb] = compute(pooled_of(x_ref.at[bb])).astype(out_ref.dtype)

    return kernel


def down_forward(x, params, eps=1e-5, tb=None, fuse_pool=True):
    """x: (B, Cin, L) float32 (PyTorch NCL). Returns (B, Cout, L//2) NCL."""
    (w1, g1, be1, m1, v1), (w2, g2, be2, m2, v2) = params
    cmid, cin, _ = w1.shape
    cout = w2.shape[0]
    B, _, L = x.shape
    Lh = L // 2

    def fold(w, gamma, beta, mean, var):
        # Fold eval-mode BatchNorm into the (bias-free) conv.
        scale = gamma / jnp.sqrt(var + eps)                 # (O,)
        w_eff = w * scale[:, None, None]                    # (O, I, 3)
        b_eff = beta - mean * scale                         # (O,)
        return w_eff.astype(jnp.float32), b_eff.astype(jnp.float32)

    # TODO(synk): for large channel counts, cast taps/activations to bf16
    # (keeping f32 accumulation) to hit the native bf16 MXU path.
    w1_eff, b1 = fold(w1, g1, be1, m1, v1)                  # (Cmid, Cin, 3)
    w2_eff, b2 = fold(w2, g2, be2, m2, v2)                  # (Cout, Cmid, 3)
    w1_taps = jnp.transpose(w1_eff, (2, 1, 0))              # (3, Cin, Cmid)
    w2_taps = jnp.transpose(w2_eff, (2, 0, 1))              # (3, Cout, Cmid)
    b1_row = b1.reshape(1, cmid)
    b2_col = b2.reshape(cout, 1)

    # Channels-last so pooling is sublane-strided and conv taps are sublane
    # slices; the output side needs no transpose (kernel writes NCL directly).
    x_t = jnp.transpose(x, (0, 2, 1)).astype(jnp.float32)   # (B, L, Cin)

    if fuse_pool:
        x_in, l_in = x_t, L
    else:
        # Fallback path: pooling done by XLA in the wrapper, kernel convs only.
        x_in = jnp.max(x_t[:, :2 * Lh, :].reshape(B, Lh, 2, cin), axis=2)
        l_in = Lh

    if tb is None:
        # Keep >=2 grid steps (both v7x TCs busy) while packing batch elements
        # per step to amortize the ~0.35us/step overhead on single-TC v5e/v6e.
        tb = B // 2 if (B >= 2 and B % 2 == 0) else 1
    if B % tb != 0:
        tb = 1
    squeeze = (tb == 1)

    kernel = _make_down_kernel(tb, Lh, fuse_pool, squeeze)

    x_block = (None, l_in, cin) if squeeze else (tb, l_in, cin)
    out_block = (None, cout, Lh) if squeeze else (tb, cout, Lh)

    out = pl.pallas_call(
        kernel,
        out_shape=jax.ShapeDtypeStruct((B, cout, Lh), jnp.float32),
        grid=(B // tb,),
        in_specs=[
            pl.BlockSpec(x_block, lambda b: (b, 0, 0)),
            pl.BlockSpec((3, cin, cmid), lambda b: (0, 0, 0)),    # VMEM-resident
            pl.BlockSpec((3, cout, cmid), lambda b: (0, 0, 0)),   # VMEM-resident
            pl.BlockSpec((1, cmid), lambda b: (0, 0)),
            pl.BlockSpec((cout, 1), lambda b: (0, 0)),
        ],
        out_specs=pl.BlockSpec(out_block, lambda b: (b, 0, 0)),
        compiler_params=pltpu.CompilerParams(
            dimension_semantics=("parallel",)),
    )(x_in, w1_taps, w2_taps, b1_row, b2_col)

    return out                                              # (B, Cout, Lh) NCL


# ----------------------------- pure-JAX reference -----------------------------
def down_reference(x, params, eps=1e-5):
    (w1, g1, be1, m1, v1), (w2, g2, be2, m2, v2) = params
    B, Cin, L = x.shape
    Lh = L // 2
    p = x[:, :, : Lh * 2].reshape(B, Cin, Lh, 2).max(axis=-1)

    def conv_bn_relu(h, w, gamma, beta, mean, var):
        hp = jnp.pad(h, ((0, 0), (0, 0), (1, 1)))
        y = sum(
            jnp.einsum("bil,oi->bol", hp[:, :, k:k + h.shape[-1]], w[:, :, k],
                       precision=jax.lax.Precision.HIGHEST)
            for k in range(3))
        y = (y - mean[None, :, None]) / jnp.sqrt(var + eps)[None, :, None]
        y = y * gamma[None, :, None] + beta[None, :, None]
        return jnp.maximum(y, 0.0)

    h1 = conv_bn_relu(p, w1, g1, be1, m1, v1)
    h2 = conv_bn_relu(h1, w2, g2, be2, m2, v2)
    return h2


def init_params(key, in_channels, out_channels):
    k1, k2, k3, k4 = jax.random.split(key, 4)

    def conv_w(k, o, i):
        bound = 1.0 / math.sqrt(i * 3)
        return jax.random.uniform(k, (o, i, 3), jnp.float32, -bound, bound)

    def bn(k, c):
        kg, kb, km, kv = jax.random.split(k, 4)
        gamma = jax.random.uniform(kg, (c,), jnp.float32, 0.5, 1.5)
        beta = jax.random.uniform(kb, (c,), jnp.float32, -0.5, 0.5)
        mean = 0.1 * jax.random.normal(km, (c,), jnp.float32)
        var = jax.random.uniform(kv, (c,), jnp.float32, 0.5, 1.5)
        return gamma, beta, mean, var

    w1 = conv_w(k1, out_channels, in_channels)
    g1, be1, m1, v1 = bn(k2, out_channels)
    w2 = conv_w(k3, out_channels, out_channels)
    g2, be2, m2, v2 = bn(k4, out_channels)
    return [(w1, g1, be1, m1, v1), (w2, g2, be2, m2, v2)]


if __name__ == "__main__":
    B, Cin, Cout, L = 2, 4, 8, 16

    key = jax.random.PRNGKey(0)
    kx, kp = jax.random.split(key)
    x = jax.random.normal(kx, (B, Cin, L), jnp.float32)
    params = init_params(kp, Cin, Cout)

    try:
        out = jax.block_until_ready(down_forward(x, params))
    except Exception:
        # Safety net: if fused strided-read pooling ever fails to lower, fall
        # back to wrapper-side pooling + the same fused double-conv kernel.
        out = jax.block_until_ready(down_forward(x, params, fuse_pool=False))

    ref = down_reference(x, params)
    assert out.shape == (B, Cout, L // 2)
    assert jnp.allclose(out, ref, atol=1e-3, rtol=1e-3), "mismatch vs reference"

    print("KERNEL_OK")
</pallas_src>

<mosaic_0001>
module attributes {stable_mosaic.version = 11 : i64} {
  func.func @kernel(%arg0: i32, %arg1: memref<1x16x4xf32, #tpu.memory_space<vmem>>, %arg2: memref<3x4x8xf32, #tpu.memory_space<vmem>>, %arg3: memref<3x8x8xf32, #tpu.memory_space<vmem>>, %arg4: memref<1x8xf32, #tpu.memory_space<vmem>>, %arg5: memref<8x1xf32, #tpu.memory_space<vmem>>, %arg6: memref<1x8x8xf32, #tpu.memory_space<vmem>>) attributes {dimension_semantics = [#tpu.dimension_semantics<parallel>], iteration_bounds = array<i64: 2>, scalar_prefetch = 0 : i64, scratch_operands = 0 : i64, tpu.core_type = #tpu.core_type<tc>, window_params = [{transform_indices = @transform_0, window_bounds = array<i64: 1, 16, 4>}, {pipeline_mode = #tpu.pipeline_mode<synchronous>, transform_indices = @transform_1, window_bounds = array<i64: 3, 4, 8>}, {pipeline_mode = #tpu.pipeline_mode<synchronous>, transform_indices = @transform_2, window_bounds = array<i64: 3, 8, 8>}, {pipeline_mode = #tpu.pipeline_mode<synchronous>, transform_indices = @transform_3, window_bounds = array<i64: 1, 8>}, {pipeline_mode = #tpu.pipeline_mode<synchronous>, transform_indices = @transform_4, window_bounds = array<i64: 8, 1>}, {transform_indices = @transform_5, window_bounds = array<i64: 1, 8, 8>}]} {
    %c0 = arith.constant 0 : index
    %c0_0 = arith.constant 0 : index
    %c0_1 = arith.constant 0 : index
    %0 = vector.load %arg2[%c0, %c0_0, %c0_1] : memref<3x4x8xf32, #tpu.memory_space<vmem>>, vector<1x4x8xf32>
    %1 = vector.shape_cast %0 : vector<1x4x8xf32> to vector<4x8xf32>
    %c1 = arith.constant 1 : index
    %c0_2 = arith.constant 0 : index
    %c0_3 = arith.constant 0 : index
    %2 = vector.load %arg2[%c1, %c0_2, %c0_3] : memref<3x4x8xf32, #tpu.memory_space<vmem>>, vector<1x4x8xf32>
    %3 = vector.shape_cast %2 : vector<1x4x8xf32> to vector<4x8xf32>
    %c2 = arith.constant 2 : index
    %c0_4 = arith.constant 0 : index
    %c0_5 = arith.constant 0 : index
    %4 = vector.load %arg2[%c2, %c0_4, %c0_5] : memref<3x4x8xf32, #tpu.memory_space<vmem>>, vector<1x4x8xf32>
    %5 = vector.shape_cast %4 : vector<1x4x8xf32> to vector<4x8xf32>
    %c0_6 = arith.constant 0 : index
    %c0_7 = arith.constant 0 : index
    %c0_8 = arith.constant 0 : index
    %6 = vector.load %arg3[%c0_6, %c0_7, %c0_8] : memref<3x8x8xf32, #tpu.memory_space<vmem>>, vector<1x8x8xf32>
    %7 = vector.shape_cast %6 : vector<1x8x8xf32> to vector<8x8xf32>
    %c1_9 = arith.constant 1 : index
    %c0_10 = arith.constant 0 : index
    %c0_11 = arith.constant 0 : index
    %8 = vector.load %arg3[%c1_9, %c0_10, %c0_11] : memref<3x8x8xf32, #tpu.memory_space<vmem>>, vector<1x8x8xf32>
    %9 = vector.shape_cast %8 : vector<1x8x8xf32> to vector<8x8xf32>
    %c2_12 = arith.constant 2 : index
    %c0_13 = arith.constant 0 : index
    %c0_14 = arith.constant 0 : index
    %10 = vector.load %arg3[%c2_12, %c0_13, %c0_14] : memref<3x8x8xf32, #tpu.memory_space<vmem>>, vector<1x8x8xf32>
    %11 = vector.shape_cast %10 : vector<1x8x8xf32> to vector<8x8xf32>
    %c0_15 = arith.constant 0 : index
    %c0_16 = arith.constant 0 : index
    %12 = vector.load %arg4[%c0_15, %c0_16] : memref<1x8xf32, #tpu.memory_space<vmem>>, vector<1x8xf32>
    %c0_17 = arith.constant 0 : index
    %c0_18 = arith.constant 0 : index
    %13 = vector.load %arg5[%c0_17, %c0_18] : memref<8x1xf32, #tpu.memory_space<vmem>>, vector<8x1xf32>
    %c0_19 = arith.constant 0 : index
    %c0_20 = arith.constant 0 : index
    %c0_21 = arith.constant 0 : index
    %14 = tpu.strided_load %arg1[%c0_19, %c0_20, %c0_21] {strides = array<i32: 1, 2, 1>} : memref<1x16x4xf32, #tpu.memory_space<vmem>>, vector<1x8x4xf32>
    %15 = vector.shape_cast %14 : vector<1x8x4xf32> to vector<8x4xf32>
    %c0_22 = arith.constant 0 : index
    %c1_23 = arith.constant 1 : index
    %c0_24 = arith.constant 0 : index
    %16 = tpu.strided_load %arg1[%c0_22, %c1_23, %c0_24] {strides = array<i32: 1, 2, 1>} : memref<1x16x4xf32, #tpu.memory_space<vmem>>, vector<1x8x4xf32>
    %17 = vector.shape_cast %16 : vector<1x8x4xf32> to vector<8x4xf32>
    %18 = arith.maximumf %15, %17 : vector<8x4xf32>
    %cst = arith.constant 0.000000e+00 : f32
    %19 = vector.broadcast %cst : f32 to vector<1x4xf32>
    %20 = tpu.concatenate %19, %18, %19 in 0 : vector<1x4xf32>, vector<8x4xf32>, vector<1x4xf32> -> vector<10x4xf32>
    %21 = vector.extract_strided_slice %20 {offsets = [0, 0], sizes = [8, 4], strides = [1, 1]} : vector<10x4xf32> to vector<8x4xf32>
    %cst_25 = arith.constant dense<0.000000e+00> : vector<8x8xf32>
    %22 = tpu.matmul %21, %1, %cst_25 {dimension_numbers = #tpu.dot_dimension_numbers<[1], [0], [0], [1], [0, 0, 1, 1], [], []>} : vector<8x4xf32>, vector<4x8xf32>, vector<8x8xf32> -> vector<8x8xf32>
    %23 = vector.extract_strided_slice %20 {offsets = [1, 0], sizes = [8, 4], strides = [1, 1]} : vector<10x4xf32> to vector<8x4xf32>
    %cst_26 = arith.constant dense<0.000000e+00> : vector<8x8xf32>
    %24 = tpu.matmul %23, %3, %cst_26 {dimension_numbers = #tpu.dot_dimension_numbers<[1], [0], [0], [1], [0, 0, 1, 1], [], []>} : vector<8x4xf32>, vector<4x8xf32>, vector<8x8xf32> -> vector<8x8xf32>
    %25 = arith.addf %22, %24 : vector<8x8xf32>
    %26 = vector.extract_strided_slice %20 {offsets = [2, 0], sizes = [8, 4], strides = [1, 1]} : vector<10x4xf32> to vector<8x4xf32>
    %cst_27 = arith.constant dense<0.000000e+00> : vector<8x8xf32>
    %27 = tpu.matmul %26, %5, %cst_27 {dimension_numbers = #tpu.dot_dimension_numbers<[1], [0], [0], [1], [0, 0, 1, 1], [], []>} : vector<8x4xf32>, vector<4x8xf32>, vector<8x8xf32> -> vector<8x8xf32>
    %28 = arith.addf %25, %27 : vector<8x8xf32>
    %29 = vector.broadcast %12 : vector<1x8xf32> to vector<8x8xf32>
    %30 = arith.addf %28, %29 : vector<8x8xf32>
    %cst_28 = arith.constant 0.000000e+00 : f32
    %31 = vector.broadcast %cst_28 : f32 to vector<8x8xf32>
    %32 = arith.maximumf %30, %31 : vector<8x8xf32>
    %cst_29 = arith.constant 0.000000e+00 : f32
    %33 = vector.broadcast %cst_29 : f32 to vector<1x8xf32>
    %34 = tpu.concatenate %33, %32, %33 in 0 : vector<1x8xf32>, vector<8x8xf32>, vector<1x8xf32> -> vector<10x8xf32>
    %35 = vector.extract_strided_slice %34 {offsets = [0, 0], sizes = [8, 8], strides = [1, 1]} : vector<10x8xf32> to vector<8x8xf32>
    %cst_30 = arith.constant dense<0.000000e+00> : vector<8x8xf32>
    %36 = tpu.matmul %7, %35, %cst_30 {dimension_numbers = #tpu.dot_dimension_numbers<[1], [1], [0], [0], [0, 0, 1, 0], [], []>} : vector<8x8xf32>, vector<8x8xf32>, vector<8x8xf32> -> vector<8x8xf32>
    %37 = vector.extract_strided_slice %34 {offsets = [1, 0], sizes = [8, 8], strides = [1, 1]} : vector<10x8xf32> to vector<8x8xf32>
    %cst_31 = arith.constant dense<0.000000e+00> : vector<8x8xf32>
    %38 = tpu.matmul %9, %37, %cst_31 {dimension_numbers = #tpu.dot_dimension_numbers<[1], [1], [0], [0], [0, 0, 1, 0], [], []>} : vector<8x8xf32>, vector<8x8xf32>, vector<8x8xf32> -> vector<8x8xf32>
    %39 = arith.addf %36, %38 : vector<8x8xf32>
    %40 = vector.extract_strided_slice %34 {offsets = [2, 0], sizes = [8, 8], strides = [1, 1]} : vector<10x8xf32> to vector<8x8xf32>
    %cst_32 = arith.constant dense<0.000000e+00> : vector<8x8xf32>
    %41 = tpu.matmul %11, %40, %cst_32 {dimension_numbers = #tpu.dot_dimension_numbers<[1], [1], [0], [0], [0, 0, 1, 0], [], []>} : vector<8x8xf32>, vector<8x8xf32>, vector<8x8xf32> -> vector<8x8xf32>
    %42 = arith.addf %39, %41 : vector<8x8xf32>
    %43 = vector.broadcast %13 : vector<8x1xf32> to vector<8x8xf32>
    %44 = arith.addf %42, %43 : vector<8x8xf32>
    %cst_33 = arith.constant 0.000000e+00 : f32
    %45 = vector.broadcast %cst_33 : f32 to vector<8x8xf32>
    %46 = arith.maximumf %44, %45 : vector<8x8xf32>
    %c0_34 = arith.constant 0 : index
    %c0_35 = arith.constant 0 : index
    %c0_36 = arith.constant 0 : index
    %47 = vector.load %arg6[%c0_34, %c0_35, %c0_36] : memref<1x8x8xf32, #tpu.memory_space<vmem>>, vector<1x8x8xf32>
    %48 = vector.shape_cast %47 : vector<1x8x8xf32> to vector<8x8xf32>
    %49 = vector.shape_cast %46 : vector<8x8xf32> to vector<1x8x8xf32>
    tpu.vector_store %arg6[%c0_34, %c0_35, %c0_36], %49 {strides = array<i32>} : memref<1x8x8xf32, #tpu.memory_space<vmem>>, vector<1x8x8xf32>,
    return
  }
  func.func @transform_0(%arg0: i32) -> (i32, i32, i32) {
    %c0_i32 = arith.constant 0 : i32
    %c0_i32_0 = arith.constant 0 : i32
    %c0_i32_1 = arith.constant 0 : i32
    return %arg0, %c0_i32, %c0_i32_0 : i32, i32, i32
  }
  func.func @transform_1(%arg0: i32) -> (i32, i32, i32) {
    %c0_i32 = arith.constant 0 : i32
    %c0_i32_0 = arith.constant 0 : i32
    %c0_i32_1 = arith.constant 0 : i32
    %c0_i32_2 = arith.constant 0 : i32
    return %c0_i32, %c0_i32_0, %c0_i32_1 : i32, i32, i32
  }
  func.func @transform_2(%arg0: i32) -> (i32, i32, i32) {
    %c0_i32 = arith.constant 0 : i32
    %c0_i32_0 = arith.constant 0 : i32
    %c0_i32_1 = arith.constant 0 : i32
    %c0_i32_2 = arith.constant 0 : i32
    return %c0_i32, %c0_i32_0, %c0_i32_1 : i32, i32, i32
  }
  func.func @transform_3(%arg0: i32) -> (i32, i32) {
    %c0_i32 = arith.constant 0 : i32
    %c0_i32_0 = arith.constant 0 : i32
    %c0_i32_1 = arith.constant 0 : i32
    return %c0_i32, %c0_i32_0 : i32, i32
  }
  func.func @transform_4(%arg0: i32) -> (i32, i32) {
    %c0_i32 = arith.constant 0 : i32
    %c0_i32_0 = arith.constant 0 : i32
    %c0_i32_1 = arith.constant 0 : i32
    return %c0_i32, %c0_i32_0 : i32, i32
  }
  func.func @transform_5(%arg0: i32) -> (i32, i32, i32) {
    %c0_i32 = arith.constant 0 : i32
    %c0_i32_0 = arith.constant 0 : i32
    %c0_i32_1 = arith.constant 0 : i32
    return %arg0, %c0_i32, %c0_i32_0 : i32, i32, i32
  }
}

module attributes {stable_mosaic.version = 11 : i64} {
  func.func @kernel(%arg0: i32, %arg1: memref<1x8x4xf32, #tpu.memory_space<vmem>>, %arg2: memref<3x4x8xf32, #tpu.memory_space<vmem>>, %arg3: memref<3x8x8xf32, #tpu.memory_space<vmem>>, %arg4: memref<1x8xf32, #tpu.memory_space<vmem>>, %arg5: memref<8x1xf32, #tpu.memory_space<vmem>>, %arg6: memref<1x8x8xf32, #tpu.memory_space<vmem>>) attributes {dimension_semantics = [#tpu.dimension_semantics<parallel>], iteration_bounds = array<i64: 2>, scalar_prefetch = 0 : i64, scratch_operands = 0 : i64, tpu.core_type = #tpu.core_type<tc>, window_params = [{transform_indices = @transform_0, window_bounds = array<i64: 1, 8, 4>}, {pipeline_mode = #tpu.pipeline_mode<synchronous>, transform_indices = @transform_1, window_bounds = array<i64: 3, 4, 8>}, {pipeline_mode = #tpu.pipeline_mode<synchronous>, transform_indices = @transform_2, window_bounds = array<i64: 3, 8, 8>}, {pipeline_mode = #tpu.pipeline_mode<synchronous>, transform_indices = @transform_3, window_bounds = array<i64: 1, 8>}, {pipeline_mode = #tpu.pipeline_mode<synchronous>, transform_indices = @transform_4, window_bounds = array<i64: 8, 1>}, {transform_indices = @transform_5, window_bounds = array<i64: 1, 8, 8>}]} {
    %c0 = arith.constant 0 : index
    %c0_0 = arith.constant 0 : index
    %c0_1 = arith.constant 0 : index
    %0 = vector.load %arg2[%c0, %c0_0, %c0_1] : memref<3x4x8xf32, #tpu.memory_space<vmem>>, vector<1x4x8xf32>
    %1 = vector.shape_cast %0 : vector<1x4x8xf32> to vector<4x8xf32>
    %c1 = arith.constant 1 : index
    %c0_2 = arith.constant 0 : index
    %c0_3 = arith.constant 0 : index
    %2 = vector.load %arg2[%c1, %c0_2, %c0_3] : memref<3x4x8xf32, #tpu.memory_space<vmem>>, vector<1x4x8xf32>
    %3 = vector.shape_cast %2 : vector<1x4x8xf32> to vector<4x8xf32>
    %c2 = arith.constant 2 : index
    %c0_4 = arith.constant 0 : index
    %c0_5 = arith.constant 0 : index
    %4 = vector.load %arg2[%c2, %c0_4, %c0_5] : memref<3x4x8xf32, #tpu.memory_space<vmem>>, vector<1x4x8xf32>
    %5 = vector.shape_cast %4 : vector<1x4x8xf32> to vector<4x8xf32>
    %c0_6 = arith.constant 0 : index
    %c0_7 = arith.constant 0 : index
    %c0_8 = arith.constant 0 : index
    %6 = vector.load %arg3[%c0_6, %c0_7, %c0_8] : memref<3x8x8xf32, #tpu.memory_space<vmem>>, vector<1x8x8xf32>
    %7 = vector.shape_cast %6 : vector<1x8x8xf32> to vector<8x8xf32>
    %c1_9 = arith.constant 1 : index
    %c0_10 = arith.constant 0 : index
    %c0_11 = arith.constant 0 : index
    %8 = vector.load %arg3[%c1_9, %c0_10, %c0_11] : memref<3x8x8xf32, #tpu.memory_space<vmem>>, vector<1x8x8xf32>
    %9 = vector.shape_cast %8 : vector<1x8x8xf32> to vector<8x8xf32>
    %c2_12 = arith.constant 2 : index
    %c0_13 = arith.constant 0 : index
    %c0_14 = arith.constant 0 : index
    %10 = vector.load %arg3[%c2_12, %c0_13, %c0_14] : memref<3x8x8xf32, #tpu.memory_space<vmem>>, vector<1x8x8xf32>
    %11 = vector.shape_cast %10 : vector<1x8x8xf32> to vector<8x8xf32>
    %c0_15 = arith.constant 0 : index
    %c0_16 = arith.constant 0 : index
    %12 = vector.load %arg4[%c0_15, %c0_16] : memref<1x8xf32, #tpu.memory_space<vmem>>, vector<1x8xf32>
    %c0_17 = arith.constant 0 : index
    %c0_18 = arith.constant 0 : index
    %13 = vector.load %arg5[%c0_17, %c0_18] : memref<8x1xf32, #tpu.memory_space<vmem>>, vector<8x1xf32>
    %c0_19 = arith.constant 0 : index
    %c0_20 = arith.constant 0 : index
    %c0_21 = arith.constant 0 : index
    %14 = vector.load %arg1[%c0_19, %c0_20, %c0_21] : memref<1x8x4xf32, #tpu.memory_space<vmem>>, vector<1x8x4xf32>
    %15 = vector.shape_cast %14 : vector<1x8x4xf32> to vector<8x4xf32>
    %cst = arith.constant 0.000000e+00 : f32
    %16 = vector.broadcast %cst : f32 to vector<1x4xf32>
    %17 = tpu.concatenate %16, %15, %16 in 0 : vector<1x4xf32>, vector<8x4xf32>, vector<1x4xf32> -> vector<10x4xf32>
    %18 = vector.extract_strided_slice %17 {offsets = [0, 0], sizes = [8, 4], strides = [1, 1]} : vector<10x4xf32> to vector<8x4xf32>
    %cst_22 = arith.constant dense<0.000000e+00> : vector<8x8xf32>
    %19 = tpu.matmul %18, %1, %cst_22 {dimension_numbers = #tpu.dot_dimension_numbers<[1], [0], [0], [1], [0, 0, 1, 1], [], []>} : vector<8x4xf32>, vector<4x8xf32>, vector<8x8xf32> -> vector<8x8xf32>
    %20 = vector.extract_strided_slice %17 {offsets = [1, 0], sizes = [8, 4], strides = [1, 1]} : vector<10x4xf32> to vector<8x4xf32>
    %cst_23 = arith.constant dense<0.000000e+00> : vector<8x8xf32>
    %21 = tpu.matmul %20, %3, %cst_23 {dimension_numbers = #tpu.dot_dimension_numbers<[1], [0], [0], [1], [0, 0, 1, 1], [], []>} : vector<8x4xf32>, vector<4x8xf32>, vector<8x8xf32> -> vector<8x8xf32>
    %22 = arith.addf %19, %21 : vector<8x8xf32>
    %23 = vector.extract_strided_slice %17 {offsets = [2, 0], sizes = [8, 4], strides = [1, 1]} : vector<10x4xf32> to vector<8x4xf32>
    %cst_24 = arith.constant dense<0.000000e+00> : vector<8x8xf32>
    %24 = tpu.matmul %23, %5, %cst_24 {dimension_numbers = #tpu.dot_dimension_numbers<[1], [0], [0], [1], [0, 0, 1, 1], [], []>} : vector<8x4xf32>, vector<4x8xf32>, vector<8x8xf32> -> vector<8x8xf32>
    %25 = arith.addf %22, %24 : vector<8x8xf32>
    %26 = vector.broadcast %12 : vector<1x8xf32> to vector<8x8xf32>
    %27 = arith.addf %25, %26 : vector<8x8xf32>
    %cst_25 = arith.constant 0.000000e+00 : f32
    %28 = vector.broadcast %cst_25 : f32 to vector<8x8xf32>
    %29 = arith.maximumf %27, %28 : vector<8x8xf32>
    %cst_26 = arith.constant 0.000000e+00 : f32
    %30 = vector.broadcast %cst_26 : f32 to vector<1x8xf32>
    %31 = tpu.concatenate %30, %29, %30 in 0 : vector<1x8xf32>, vector<8x8xf32>, vector<1x8xf32> -> vector<10x8xf32>
    %32 = vector.extract_strided_slice %31 {offsets = [0, 0], sizes = [8, 8], strides = [1, 1]} : vector<10x8xf32> to vector<8x8xf32>
    %cst_27 = arith.constant dense<0.000000e+00> : vector<8x8xf32>
    %33 = tpu.matmul %7, %32, %cst_27 {dimension_numbers = #tpu.dot_dimension_numbers<[1], [1], [0], [0], [0, 0, 1, 0], [], []>} : vector<8x8xf32>, vector<8x8xf32>, vector<8x8xf32> -> vector<8x8xf32>
    %34 = vector.extract_strided_slice %31 {offsets = [1, 0], sizes = [8, 8], strides = [1, 1]} : vector<10x8xf32> to vector<8x8xf32>
    %cst_28 = arith.constant dense<0.000000e+00> : vector<8x8xf32>
    %35 = tpu.matmul %9, %34, %cst_28 {dimension_numbers = #tpu.dot_dimension_numbers<[1], [1], [0], [0], [0, 0, 1, 0], [], []>} : vector<8x8xf32>, vector<8x8xf32>, vector<8x8xf32> -> vector<8x8xf32>
    %36 = arith.addf %33, %35 : vector<8x8xf32>
    %37 = vector.extract_strided_slice %31 {offsets = [2, 0], sizes = [8, 8], strides = [1, 1]} : vector<10x8xf32> to vector<8x8xf32>
    %cst_29 = arith.constant dense<0.000000e+00> : vector<8x8xf32>
    %38 = tpu.matmul %11, %37, %cst_29 {dimension_numbers = #tpu.dot_dimension_numbers<[1], [1], [0], [0], [0, 0, 1, 0], [], []>} : vector<8x8xf32>, vector<8x8xf32>, vector<8x8xf32> -> vector<8x8xf32>
    %39 = arith.addf %36, %38 : vector<8x8xf32>
    %40 = vector.broadcast %13 : vector<8x1xf32> to vector<8x8xf32>
    %41 = arith.addf %39, %40 : vector<8x8xf32>
    %cst_30 = arith.constant 0.000000e+00 : f32
    %42 = vector.broadcast %cst_30 : f32 to vector<8x8xf32>
    %43 = arith.maximumf %41, %42 : vector<8x8xf32>
    %c0_31 = arith.constant 0 : index
    %c0_32 = arith.constant 0 : index
    %c0_33 = arith.constant 0 : index
    %44 = vector.load %arg6[%c0_31, %c0_32, %c0_33] : memref<1x8x8xf32, #tpu.memory_space<vmem>>, vector<1x8x8xf32>
    %45 = vector.shape_cast %44 : vector<1x8x8xf32> to vector<8x8xf32>
    %46 = vector.shape_cast %43 : vector<8x8xf32> to vector<1x8x8xf32>
    tpu.vector_store %arg6[%c0_31, %c0_32, %c0_33], %46 {strides = array<i32>} : memref<1x8x8xf32, #tpu.memory_space<vmem>>, vector<1x8x8xf32>,
    return
  }
  func.func @transform_0(%arg0: i32) -> (i32, i32, i32) {
    %c0_i32 = arith.constant 0 : i32
    %c0_i32_0 = arith.constant 0 : i32
    %c0_i32_1 = arith.constant 0 : i32
    return %arg0, %c0_i32, %c0_i32_0 : i32, i32, i32
  }
  func.func @transform_1(%arg0: i32) -> (i32, i32, i32) {
    %c0_i32 = arith.constant 0 : i32
    %c0_i32_0 = arith.constant 0 : i32
    %c0_i32_1 = arith.constant 0 : i32
    %c0_i32_2 = arith.constant 0 : i32
    return %c0_i32, %c0_i32_0, %c0_i32_1 : i32, i32, i32
  }
  func.func @transform_2(%arg0: i32) -> (i32, i32, i32) {
    %c0_i32 = arith.constant 0 : i32
    %c0_i32_0 = arith.constant 0 : i32
    %c0_i32_1 = arith.constant 0 : i32
    %c0_i32_2 = arith.constant 0 : i32
    return %c0_i32, %c0_i32_0, %c0_i32_1 : i32, i32, i32
  }
  func.func @transform_3(%arg0: i32) -> (i32, i32) {
    %c0_i32 = arith.constant 0 : i32
    %c0_i32_0 = arith.constant 0 : i32
    %c0_i32_1 = arith.constant 0 : i32
    return %c0_i32, %c0_i32_0 : i32, i32
  }
  func.func @transform_4(%arg0: i32) -> (i32, i32) {
    %c0_i32 = arith.constant 0 : i32
    %c0_i32_0 = arith.constant 0 : i32
    %c0_i32_1 = arith.constant 0 : i32
    return %c0_i32, %c0_i32_0 : i32, i32
  }
  func.func @transform_5(%arg0: i32) -> (i32, i32, i32) {
    %c0_i32 = arith.constant 0 : i32
    %c0_i32_0 = arith.constant 0 : i32
    %c0_i32_1 = arith.constant 0 : i32
    return %arg0, %c0_i32, %c0_i32_0 : i32, i32, i32
  }
}

</mosaic_0001>

<llo_original>
// kernel: tpu_custom_call.1
$region0: #{tpu_custom_call.1}
  #allocation0 [shape = 'u32[]', space=smem, size = 0x4, offset = 0x4, fixed_abs, tag = 'smem constant byte address 0x4 - core index']
  #allocation1 [shape = 'u32[72,128]{1,0:T(1,128)}', space=vmem, size = 0x9000, scoped, tag = 'internal scratch']
  %s0 = inlined_call_operand.vmem [shape: f32[2,16,4], index: 0, kind: input, shape index: {}]
  %s1 = inlined_call_operand.vmem [shape: f32[3,4,8], index: 1, kind: input, shape index: {}]
  %s2 = inlined_call_operand.vmem [shape: f32[3,8,8], index: 2, kind: input, shape index: {}]
  %s3 = inlined_call_operand.vmem [shape: f32[1,8], index: 3, kind: input, shape index: {}]
  %s4 = inlined_call_operand.vmem [shape: f32[8,1], index: 4, kind: input, shape index: {}]
  %s5 = inlined_call_operand.hbm [shape: f32[2,8,8], index: 5, kind: output, shape index: {}]
  %s6 = sld [smem:[#allocation0]]
  $region53: #{tpu_custom_call.1} parent=0
    _
  %s8 = ssub.s32 1, %s6
  %s9 = scalar_select 0, %s8, %s6
  $region1: #{tpu_custom_call.1} parent=0
    #allocation2 [shape = 'u8[8192]{0}', space=vmem, size = 0x2000, scoped, tag = 'output window, operand 0']
    #allocation3 [shape = 's32[2]{0}', space=sflag, size = 0x8, scoped, tag = 'scoped memory for tpu_custom_call.1']
    %10 = vsyncpa [#allocation3], 0
    %s11 = scalar_lea.sflag [#allocation3], 1
    %12 = vsyncpa %s11, 0
    loop: start=0, step=1, limit=4
    $region2: #{tpu_custom_call.1} parent=1 // loop_pre_header
      _
    $region3: #{tpu_custom_call.1} parent=1 // loop_header
      %s14 = sphi 0, %s18
      %p15 = scmp.ge.s32.totalorder %s14, 4
      %s24 = sphi 0, %s26
      %s27 = sphi 0, %s24
      %s28 = sphi 0, %s27
      %s44 = sphi 0, %s28
      %s48 = sphi 0, %s48
      %s50 = sphi 0, %s48
      %s51 = sphi 0, %s50
      %s65 = sphi 0, %s51
      %s69 = sphi 0, %s69
      %s71 = sphi 0, %s69
      %s72 = sphi 0, %s71
      %s86 = sphi 0, %s72
      %s90 = sphi 0, %s90
      %s92 = sphi 0, %s90
      %s93 = sphi 0, %s92
      %s107 = sphi 0, %s93
      %s111 = sphi 0, %s111
      %s113 = sphi 0, %s111
      %s114 = sphi 0, %s113
      %s128 = sphi 0, %s114
      %s134 = sphi 0, %s136
      %s137 = sphi 0, %s134
      %s138 = sphi 0, %s137
      %s154 = sphi 0, %s138
    $region4: #{tpu_custom_call.1} parent=1 // loop_header_branch
      %17 = sbr.rel (%p15) target = $region8
    $region5: #{tpu_custom_call.1} parent=1 // loop_body
      %s19 = ssub.s32 %s14, 1
      %s20 = ssub.s32 %s14, 2
      %s21 = sadd.s32 %s14, 1
      %s22 = ssub.s32 %s14, %s21
      %p23 = scmp.eq.s32.totalorder %s22, 0
      %s25 = sadd.s32 %s24, 1
      %s26 = scalar_select %p23, %s24, %s25
      %p29 = pneg %p23
      %p30 = scmp.eq.s32.totalorder %s14, 1
      %p31 = por %p29, %p30
      %p32 = scmp.ne.s32.totalorder %s24, %s27
      %p33 = scmp.eq.s32.totalorder %s14, 0
      %p34 = por %p32, %p33
      %p35 = scmp.ne.s32.totalorder %s24, %s27
      %p36 = scmp.eq.s32.totalorder %s19, 1
      %p37 = por %p35, %p36
      %p38 = scmp.ne.s32.totalorder %s27, %s28
      %p39 = scmp.eq.s32.totalorder %s19, 0
      %p40 = por %p38, %p39
      %p41 = scmp.ne.s32.totalorder %s27, %s28
      %p42 = scmp.eq.s32.totalorder %s20, 1
      %p43 = por %p41, %p42
      %p45 = scmp.ne.s32.totalorder %s28, %s44
      %p46 = scmp.eq.s32.totalorder %s20, 0
      %p47 = por %p45, %p46
      %s49 = sadd.s32 %s48, 1
      %p52 = scmp.eq.s32.totalorder %s14, 1
      %p53 = scmp.ne.s32.totalorder %s48, %s50
      %p54 = scmp.eq.s32.totalorder %s14, 0
      %p55 = por %p53, %p54
      %p56 = scmp.ne.s32.totalorder %s48, %s50
      %p57 = scmp.eq.s32.totalorder %s19, 1
      %p58 = por %p56, %p57
      %p59 = scmp.ne.s32.totalorder %s50, %s51
      %p60 = scmp.eq.s32.totalorder %s19, 0
      %p61 = por %p59, %p60
      %p62 = scmp.ne.s32.totalorder %s50, %s51
      %p63 = scmp.eq.s32.totalorder %s20, 1
      %p64 = por %p62, %p63
      %p66 = scmp.ne.s32.totalorder %s51, %s65
      %p67 = scmp.eq.s32.totalorder %s20, 0
      %p68 = por %p66, %p67
      %s70 = sadd.s32 %s69, 1
      %p73 = scmp.eq.s32.totalorder %s14, 1
      %p74 = scmp.ne.s32.totalorder %s69, %s71
      %p75 = scmp.eq.s32.totalorder %s14, 0
      %p76 = por %p74, %p75
      %p77 = scmp.ne.s32.totalorder %s69, %s71
      %p78 = scmp.eq.s32.totalorder %s19, 1
      %p79 = por %p77, %p78
      %p80 = scmp.ne.s32.totalorder %s71, %s72
      %p81 = scmp.eq.s32.totalorder %s19, 0
      %p82 = por %p80, %p81
      %p83 = scmp.ne.s32.totalorder %s71, %s72
      %p84 = scmp.eq.s32.totalorder %s20, 1
      %p85 = por %p83, %p84
      %p87 = scmp.ne.s32.totalorder %s72, %s86
      %p88 = scmp.eq.s32.totalorder %s20, 0
      %p89 = por %p87, %p88
      %s91 = sadd.s32 %s90, 1
      %p94 = scmp.eq.s32.totalorder %s14, 1
      %p95 = scmp.ne.s32.totalorder %s90, %s92
      %p96 = scmp.eq.s32.totalorder %s14, 0
      %p97 = por %p95, %p96
      %p98 = scmp.ne.s32.totalorder %s90, %s92
      %p99 = scmp.eq.s32.totalorder %s19, 1
      %p100 = por %p98, %p99
      %p101 = scmp.ne.s32.totalorder %s92, %s93
      %p102 = scmp.eq.s32.totalorder %s19, 0
      %p103 = por %p101, %p102
      %p104 = scmp.ne.s32.totalorder %s92, %s93
      %p105 = scmp.eq.s32.totalorder %s20, 1
      %p106 = por %p104, %p105
      %p108 = scmp.ne.s32.totalorder %s93, %s107
      %p109 = scmp.eq.s32.totalorder %s20, 0
      %p110 = por %p108, %p109
      %s112 = sadd.s32 %s111, 1
      %p115 = scmp.eq.s32.totalorder %s14, 1
      %p116 = scmp.ne.s32.totalorder %s111, %s113
      %p117 = scmp.eq.s32.totalorder %s14, 0
      %p118 = por %p116, %p117
      %p119 = scmp.ne.s32.totalorder %s111, %s113
      %p120 = scmp.eq.s32.totalorder %s19, 1
      %p121 = por %p119, %p120
      %p122 = scmp.ne.s32.totalorder %s113, %s114
      %p123 = scmp.eq.s32.totalorder %s19, 0
      %p124 = por %p122, %p123
      %p125 = scmp.ne.s32.totalorder %s113, %s114
      %p126 = scmp.eq.s32.totalorder %s20, 1
      %p127 = por %p125, %p126
      %p129 = scmp.ne.s32.totalorder %s114, %s128
      %p130 = scmp.eq.s32.totalorder %s20, 0
      %p131 = por %p129, %p130
      %s132 = ssub.s32 %s14, %s21
      %p133 = scmp.eq.s32.totalorder %s132, 0
      %s135 = sadd.s32 %s134, 1
      %s136 = scalar_select %p133, %s134, %s135
      %p139 = pneg %p133
      %p140 = scmp.eq.s32.totalorder %s14, 1
      %p141 = por %p139, %p140
      %p142 = scmp.ne.s32.totalorder %s134, %s137
      %p143 = scmp.eq.s32.totalorder %s14, 0
      %p144 = por %p142, %p143
      %p145 = scmp.ne.s32.totalorder %s134, %s137
      %p146 = scmp.eq.s32.totalorder %s19, 1
      %p147 = por %p145, %p146
      %p148 = scmp.ne.s32.totalorder %s137, %s138
      %p149 = scmp.eq.s32.totalorder %s19, 0
      %p150 = por %p148, %p149
      %p151 = scmp.ne.s32.totalorder %s137, %s138
      %p152 = scmp.eq.s32.totalorder %s20, 1
      %p153 = por %p151, %p152
      %p155 = scmp.ne.s32.totalorder %s138, %s154
      %p156 = scmp.eq.s32.totalorder %s20, 0
      %p157 = por %p155, %p156
      %p158 = scmp.le.s32.totalorder 1, %s14
      %p159 = scmp.lt.s32.totalorder %s14, 3
      %p160 = pnand %p158, %p159
      %p161 = pneg %p160
      // Predicated region
      $region9: #{tpu_custom_call.1} parent=5 // pred_check
        _
      $region10: #{tpu_custom_call.1} parent=5 // pred_check_branch
        %163 = sbr.rel (%p160) target = $region12
      $region11: #{tpu_custom_call.1} parent=5 // pred_region
        %s164 = ssub.s32 %s14, 1
        // Predicated region
        $region13: #{tpu_custom_call.1} parent=11 // pred_check
          %p165 = pneg %p61
        $region14: #{tpu_custom_call.1} parent=11 // pred_check_branch
          %167 = sbr.rel (%p165) target = $region16
        $region15: #{tpu_custom_call.1} parent=11 // pred_region
          _
        $region16: #{tpu_custom_call.1} parent=11 // pred_fallthru
          _
        // Predicated region
        $region17: #{tpu_custom_call.1} parent=11 // pred_check
          %p168 = pneg %p82
        $region18: #{tpu_custom_call.1} parent=11 // pred_check_branch
          %170 = sbr.rel (%p168) target = $region20
        $region19: #{tpu_custom_call.1} parent=11 // pred_region
          _
        $region20: #{tpu_custom_call.1} parent=11 // pred_fallthru
          _
        // Predicated region
        $region21: #{tpu_custom_call.1} parent=11 // pred_check
          %p171 = pneg %p103
        $region22: #{tpu_custom_call.1} parent=11 // pred_check_branch
          %173 = sbr.rel (%p171) target = $region24
        $region23: #{tpu_custom_call.1} parent=11 // pred_region
          _
        $region24: #{tpu_custom_call.1} parent=11 // pred_fallthru
          _
        // Predicated region
        $region25: #{tpu_custom_call.1} parent=11 // pred_check
          %p174 = pneg %p124
        $region26: #{tpu_custom_call.1} parent=11 // pred_check_branch
          %176 = sbr.rel (%p174) target = $region28
        $region27: #{tpu_custom_call.1} parent=11 // pred_region
          _
        $region28: #{tpu_custom_call.1} parent=11 // pred_fallthru
          _
      $region12: #{tpu_custom_call.1} parent=5 // pred_fallthru
        _
      %p177 = scmp.lt.s32.totalorder %s14, 2
      // Predicated region
      $region29: #{tpu_custom_call.1} parent=5 // pred_check
        %p178 = pneg %p177
      $region30: #{tpu_custom_call.1} parent=5 // pred_check_branch
        %180 = sbr.rel (%p178) target = $region32
      $region31: #{tpu_custom_call.1} parent=5 // pred_region
        // Predicated region
        $region33: #{tpu_custom_call.1} parent=31 // pred_check
          %p181 = pneg %p34
        $region34: #{tpu_custom_call.1} parent=31 // pred_check_branch
          %183 = sbr.rel (%p181) target = $region36
        $region35: #{tpu_custom_call.1} parent=31 // pred_region
          %p184 = scmp.lt.s32.totalorder %s14, 1
          %s185 = scalar_select %p184, %s14, 1
          %s186 = smul.addr %s185, 2
          %s187 = smul.addr %s186, 8
          %s188 = scalar_lea.vmem %s0, %s187
        $region36: #{tpu_custom_call.1} parent=31 // pred_fallthru
          _
      $region32: #{tpu_custom_call.1} parent=5 // pred_fallthru
        _
      %p189 = scmp.le.s32.totalorder 1, %s14
      %p190 = scmp.lt.s32.totalorder %s14, 3
      %p191 = pnand %p189, %p190
      %p192 = pneg %p191
      // Predicated region
      $region37: #{tpu_custom_call.1} parent=5 // pred_check
        _
      $region38: #{tpu_custom_call.1} parent=5 // pred_check_branch
        %194 = sbr.rel (%p191) target = $region40
      $region39: #{tpu_custom_call.1} parent=5 // pred_region
        %s195 = ssub.s32 %s14, 1
        %p196 = scmp.lt.s32.totalorder %s19, 1
        %s197 = scalar_select %p196, %s19, 1
        %s198 = smul.addr %s197, 2
        %s199 = smul.addr %s198, 8
        %s200 = scalar_lea.vmem %s0, %s199
        %p201 = pneg %p40
        %p202 = pneg %p37
        %p203 = pneg %p61
        %p204 = pneg %p58
        %p205 = pneg %p82
        %p206 = pneg %p79
        %p207 = pneg %p103
        %p208 = pneg %p100
        %p209 = pneg %p124
        %p210 = pneg %p121
        %p211 = pneg %p150
        %p212 = pneg %p147
        %s213 = sand.u32 %s137, 1
        %s214 = scalar_lea.sflag [#allocation3], %s213
        %s215 = sand.u32 %s137, 1
        %s216 = smul.addr %s215, 8
        %s217 = scalar_lea.vmem [#allocation2], %s216
        %p218 = scmp.lt.s32.totalorder %s19, 1
        %s219 = scalar_select %p218, %s19, 1
        %s220 = smul.addr %s219, 2
        %s221 = smul.addr %s220, 8
        %s222 = scalar_lea.vmem %s0, %s221
        %v223 = vld [vmem:[%s1] sm:$0xf]
        %s224 = scalar_lea.vmem %s1, 4
        %v225 = vld [vmem:[%s224] sm:$0xf]
        %s226 = scalar_lea.vmem %s1, 8
        %v227 = vld [vmem:[%s226] sm:$0xf]
        %v228 = vld [vmem:[%s2] sm:$0xff]
        %s229 = scalar_lea.vmem %s2, 8
        %v230 = vld [vmem:[%s229] sm:$0xff]
        %s231 = scalar_lea.vmem %s2, 16
        %v232 = vld [vmem:[%s231] sm:$0xff]
        %v233 = vld [vmem:[%s3] sm:$0x1]
        %v234 = vld [vmem:[%s4] sm:$0xff]
        %v235 = vld [vmem:[%s222] ss:$2 sm:$0xff]
        %s236 = scalar_lea.vmem %s222, 1
        %v237 = vld [vmem:[%s236] ss:$2 sm:$0xff]
        %v238 = vmax.f32 %v235, %v237
        %v240 = vrot.slane %v238, 7
        %vm242 = vcmask 1040384
        %v243 = vsel %vm242, 0.0, %v240
        %v244 = vsel %vm242, %v240, 0.0
        %vm247 = vcmask 1046528
        %v248 = vrot.slane %v243, 1
        %v249 = vrot.slane %v244, 1
        %v250 = vsel %vm247, %v248, %v249
        %vm251 = vcmask 31744
        %v252 = vsel %vm251, %v250, 0
        %vm254 = vcmask 1043456
        %v256 = vsel %vm254, %v225, 0
        %258 = vmatpush.msra.mxu0 0.0
        %259 = vmatpush.msra.mxu0 0.0
        %260 = vmatpush.msra.mxu0 0.0
        %261 = vmatpush.msra.mxu0 0.0
        %262 = vmatpush.msra.mxu0 0.0
        %263 = vmatpush.msra.mxu0 0.0
        %264 = vmatpush.msra.mxu0 0.0
        %265 = vmatpush.msra.mxu0 0.0
        %266 = vmatpush.msra.mxu0 0.0
        %267 = vmatpush.msra.mxu0 0.0
        %268 = vmatpush.msra.mxu0 0.0
        %269 = vmatpush.msra.mxu0 0.0
        %270 = vmatpush.msra.mxu0 0.0
        %271 = vmatpush.msra.mxu0 0.0
        %272 = vmatpush.msra.mxu0 0.0
        %273 = vmatpush.msra.mxu0 %v256
        %274 = vmatmul.f32.gmra.mxu0 %v252
        %v275 = vpop.f32.mrf.mxu0
        %v276 = vadd.f32 0.0, %v275
        %277 = vdwg.mxu0
        %v278 = vsel %vm251, %v243, 0
        %v281 = vsel %vm254, %v223, 0
        %283 = vmatpush.msra.mxu0 0.0
        %284 = vmatpush.msra.mxu0 0.0
        %285 = vmatpush.msra.mxu0 0.0
        %286 = vmatpush.msra.mxu0 0.0
        %287 = vmatpush.msra.mxu0 0.0
        %288 = vmatpush.msra.mxu0 0.0
        %289 = vmatpush.msra.mxu0 0.0
        %290 = vmatpush.msra.mxu0 0.0
        %291 = vmatpush.msra.mxu0 0.0
        %292 = vmatpush.msra.mxu0 0.0
        %293 = vmatpush.msra.mxu0 0.0
        %294 = vmatpush.msra.mxu0 0.0
        %295 = vmatpush.msra.mxu0 0.0
        %296 = vmatpush.msra.mxu0 0.0
        %297 = vmatpush.msra.mxu0 0.0
        %298 = vmatpush.msra.mxu0 %v281
        %299 = vmatmul.f32.gmra.mxu0 %v278
        %v300 = vpop.f32.mrf.mxu0
        %v301 = vadd.f32 %v276, %v300
        %302 = vdwg.mxu0
        %vm303 = vcmask 1045504
        %v304 = vrot.slane %v243, 2
        %v305 = vrot.slane %v244, 2
        %v306 = vsel %vm303, %v304, %v305
        %v307 = vsel %vm251, %v306, 0
        %v310 = vsel %vm254, %v227, 0
        %312 = vmatpush.msra.mxu0 0.0
        %313 = vmatpush.msra.mxu0 0.0
        %314 = vmatpush.msra.mxu0 0.0
        %315 = vmatpush.msra.mxu0 0.0
        %316 = vmatpush.msra.mxu0 0.0
        %317 = vmatpush.msra.mxu0 0.0
        %318 = vmatpush.msra.mxu0 0.0
        %319 = vmatpush.msra.mxu0 0.0
        %320 = vmatpush.msra.mxu0 0.0
        %321 = vmatpush.msra.mxu0 0.0
        %322 = vmatpush.msra.mxu0 0.0
        %323 = vmatpush.msra.mxu0 0.0
        %324 = vmatpush.msra.mxu0 0.0
        %325 = vmatpush.msra.mxu0 0.0
        %326 = vmatpush.msra.mxu0 0.0
        %327 = vmatpush.msra.mxu0 %v310
        %328 = vmatmul.f32.gmra.mxu0 %v307
        %v329 = vpop.f32.mrf.mxu0
        %v330 = vadd.f32 0.0, %v329
        %331 = vdwg.mxu0
        %v332 = vadd.f32 %v301, %v330
        %v334 = vperm.slane %v233, 0
        %v336 = vadd.f32 %v332, %v334
        %v337 = vmax.f32 %v336, 0.0
        %v339 = vrot.slane %v337, 7
        %v341 = vsel %vm242, 0.0, %v339
        %v342 = vsel %vm242, %v339, 0.0
        %v345 = vrot.slane %v341, 1
        %v346 = vrot.slane %v342, 1
        %v347 = vsel %vm247, %v345, %v346
        %vm348 = vcmask 64512
        %v350 = vsel %vm348, %v230, 0
        %v352 = vsel %vm348, %v347, 0
        %354 = vmatpush.xpose.msra.mxu0 0.0
        %355 = vmatpush.xpose.msra.mxu0 0.0
        %356 = vmatpush.xpose.msra.mxu0 0.0
        %357 = vmatpush.xpose.msra.mxu0 0.0
        %358 = vmatpush.xpose.msra.mxu0 0.0
        %359 = vmatpush.xpose.msra.mxu0 0.0
        %360 = vmatpush.xpose.msra.mxu0 0.0
        %361 = vmatpush.xpose.msra.mxu0 0.0
        %362 = vmatpush.xpose.msra.mxu0 0.0
        %363 = vmatpush.xpose.msra.mxu0 0.0
        %364 = vmatpush.xpose.msra.mxu0 0.0
        %365 = vmatpush.xpose.msra.mxu0 0.0
        %366 = vmatpush.xpose.msra.mxu0 0.0
        %367 = vmatpush.xpose.msra.mxu0 0.0
        %368 = vmatpush.xpose.msra.mxu0 0.0
        %369 = vmatpush.xpose.msra.mxu0 %v352
        %370 = vmatmul.f32.gmra.mxu0 %v350
        %v371 = vpop.f32.mrf.mxu0
        %v372 = vadd.f32 0.0, %v371
        %373 = vdwg.mxu0
        %v375 = vsel %vm348, %v228, 0
        %v377 = vsel %vm348, %v341, 0
        %379 = vmatpush.xpose.msra.mxu0 0.0
        %380 = vmatpush.xpose.msra.mxu0 0.0
        %381 = vmatpush.xpose.msra.mxu0 0.0
        %382 = vmatpush.xpose.msra.mxu0 0.0
        %383 = vmatpush.xpose.msra.mxu0 0.0
        %384 = vmatpush.xpose.msra.mxu0 0.0
        %385 = vmatpush.xpose.msra.mxu0 0.0
        %386 = vmatpush.xpose.msra.mxu0 0.0
        %387 = vmatpush.xpose.msra.mxu0 0.0
        %388 = vmatpush.xpose.msra.mxu0 0.0
        %389 = vmatpush.xpose.msra.mxu0 0.0
        %390 = vmatpush.xpose.msra.mxu0 0.0
        %391 = vmatpush.xpose.msra.mxu0 0.0
        %392 = vmatpush.xpose.msra.mxu0 0.0
        %393 = vmatpush.xpose.msra.mxu0 0.0
        %394 = vmatpush.xpose.msra.mxu0 %v377
        %395 = vmatmul.f32.gmra.mxu0 %v375
        %v396 = vpop.f32.mrf.mxu0
        %v397 = vadd.f32 %v372, %v396
        %398 = vdwg.mxu0
        %v399 = vrot.slane %v341, 2
        %v400 = vrot.slane %v342, 2
        %v401 = vsel %vm303, %v399, %v400
        %v403 = vsel %vm348, %v232, 0
        %v405 = vsel %vm348, %v401, 0
        %407 = vmatpush.xpose.msra.mxu0 0.0
        %408 = vmatpush.xpose.msra.mxu0 0.0
        %409 = vmatpush.xpose.msra.mxu0 0.0
        %410 = vmatpush.xpose.msra.mxu0 0.0
        %411 = vmatpush.xpose.msra.mxu0 0.0
        %412 = vmatpush.xpose.msra.mxu0 0.0
        %413 = vmatpush.xpose.msra.mxu0 0.0
        %414 = vmatpush.xpose.msra.mxu0 0.0
        %415 = vmatpush.xpose.msra.mxu0 0.0
        %416 = vmatpush.xpose.msra.mxu0 0.0
        %417 = vmatpush.xpose.msra.mxu0 0.0
        %418 = vmatpush.xpose.msra.mxu0 0.0
        %419 = vmatpush.xpose.msra.mxu0 0.0
        %420 = vmatpush.xpose.msra.mxu0 0.0
        %421 = vmatpush.xpose.msra.mxu0 0.0
        %422 = vmatpush.xpose.msra.mxu0 %v405
        %423 = vmatmul.f32.gmra.mxu0 %v403
        %v424 = vpop.f32.mrf.mxu0
        %v425 = vadd.f32 0.0, %v424
        %426 = vdwg.mxu0
        %v427 = vadd.f32 %v397, %v425
        %429 = vset.pattern.permute.xlu0 0
        %430 = vperm.xlu0 %429, %v234
        %v431 = vpop.permute.xlu0 %430
        %v433 = vadd.f32 %v427, %v431
        %v434 = vmax.f32 %v433, 0.0
        %435 = vst.msk [vmem:[%s217] sm:$0xff] %vm348, %v434
        %s436 = sand.u32 %s137, 1
        %s437 = scalar_lea.sflag [#allocation3], %s436
        %s438 = sand.u32 %s137, 1
        %s439 = smul.addr %s438, 8
        %s440 = scalar_lea.vmem [#allocation2], %s439
        // Predicated region
        $region41: #{tpu_custom_call.1} parent=39 // pred_check
          %p441 = pneg %p147
        $region42: #{tpu_custom_call.1} parent=39 // pred_check_branch
          %443 = sbr.rel (%p441) target = $region44
        $region43: #{tpu_custom_call.1} parent=39 // pred_region
          %445 = vsyncadd %s437, 0
          %s446 = smul.addr %s19, 8
          %s447 = scalar_lea.hbm %s5, %s446
          %s449 = sshll.u32 %s440, 4
          %s450 = int_to_ptr.vmem [resolvable:$true] %s449
          %s451 = sshll.u32 %s447, 4
          %s452 = int_to_ptr.hbm [resolvable:$true] %s451
          %454 = dma.vmem_to_hbm [thread:$0]  %s450, 128, %s452, %s437
        $region44: #{tpu_custom_call.1} parent=39 // pred_fallthru
          _
      $region40: #{tpu_custom_call.1} parent=5 // pred_fallthru
        _
      %p455 = scmp.le.s32.totalorder 2, %s14
      // Predicated region
      $region45: #{tpu_custom_call.1} parent=5 // pred_check
        %p456 = pneg %p455
      $region46: #{tpu_custom_call.1} parent=5 // pred_check_branch
        %458 = sbr.rel (%p456) target = $region48
      $region47: #{tpu_custom_call.1} parent=5 // pred_region
        %s459 = ssub.s32 %s14, 2
        // Predicated region
        $region49: #{tpu_custom_call.1} parent=47 // pred_check
          %p460 = pneg %p153
        $region50: #{tpu_custom_call.1} parent=47 // pred_check_branch
          %462 = sbr.rel (%p460) target = $region52
        $region51: #{tpu_custom_call.1} parent=47 // pred_region
          %s463 = sand.u32 %s138, 1
          %s464 = scalar_lea.sflag [#allocation3], %s463
          %s465 = sand.u32 %s138, 1
          %s466 = smul.addr %s465, 8
          %s467 = scalar_lea.vmem [#allocation2], %s466
          %469 = dma.done %s464, 128
        $region52: #{tpu_custom_call.1} parent=47 // pred_fallthru
          _
      $region48: #{tpu_custom_call.1} parent=5 // pred_fallthru
        _
    $region6: #{tpu_custom_call.1} parent=1 // loop_footer
      %s18 = sadd.s32 1, %s14
    $region7: #{tpu_custom_call.1} parent=1 // loop_footer_branch
      %13 = sbr.rel target = $region3
    $region8: #{tpu_custom_call.1} parent=1 // loop_exit
      _
    %470 = vsyncpa [#allocation3], 1
    %s471 = scalar_lea.sflag [#allocation3], 1
    %472 = vsyncpa %s471, 1

// kernel: tpu_custom_call.1
$region0: #{tpu_custom_call.1}
  #allocation0 [shape = 'u32[]', space=smem, size = 0x4, offset = 0x4, fixed_abs, tag = 'smem constant byte address 0x4 - core index']
  #allocation1 [shape = 'u32[72,128]{1,0:T(1,128)}', space=vmem, size = 0x9000, scoped, tag = 'internal scratch']
  %s0 = inlined_call_operand.vmem [shape: f32[2,8,4], index: 0, kind: input, shape index: {}]
  %s1 = inlined_call_operand.hbm [shape: f32[3,4,8], index: 1, kind: input, shape index: {}]
  %s2 = inlined_call_operand.vmem [shape: f32[3,8,8], index: 2, kind: input, shape index: {}]
  %s3 = inlined_call_operand.vmem [shape: f32[1,8], index: 3, kind: input, shape index: {}]
  %s4 = inlined_call_operand.vmem [shape: f32[8,1], index: 4, kind: input, shape index: {}]
  %s5 = inlined_call_operand.hbm [shape: f32[2,8,8], index: 5, kind: output, shape index: {}]
  %s6 = sld [smem:[#allocation0]]
  $region57: #{tpu_custom_call.1} parent=0
    _
  %s8 = ssub.s32 1, %s6
  %s9 = scalar_select 0, %s8, %s6
  $region1: #{tpu_custom_call.1} parent=0
    #allocation2 [shape = 'u8[6144]{0}', space=vmem, size = 0x1800, scoped, tag = 'input window, operand 1, single buffered']
    #allocation3 [shape = 's32[2]{0}', space=sflag, size = 0x8, scoped, tag = 'scoped memory for tpu_custom_call.1']
    #allocation4 [shape = 's32[2]{0}', space=sflag, size = 0x8, scoped, tag = 'scoped memory for tpu_custom_call.1']
    #allocation5 [shape = 'u8[8192]{0}', space=vmem, size = 0x2000, scoped, tag = 'output window, operand 0']
    %10 = vsyncpa [#allocation3], 0
    %11 = vsyncpa [#allocation4], 0
    %s12 = scalar_lea.sflag [#allocation4], 1
    %13 = vsyncpa %s12, 0
    loop: start=0, step=1, limit=4
    $region2: #{tpu_custom_call.1} parent=1 // loop_pre_header
      _
    $region3: #{tpu_custom_call.1} parent=1 // loop_header
      %s15 = sphi 0, %s19
      %p16 = scmp.ge.s32.totalorder %s15, 4
      %s25 = sphi 0, %s27
      %s28 = sphi 0, %s25
      %s29 = sphi 0, %s28
      %s45 = sphi 0, %s29
      %s49 = sphi 0, %s49
      %s51 = sphi 0, %s49
      %s52 = sphi 0, %s51
      %s66 = sphi 0, %s52
      %s70 = sphi 0, %s70
      %s72 = sphi 0, %s70
      %s73 = sphi 0, %s72
      %s87 = sphi 0, %s73
      %s91 = sphi 0, %s91
      %s93 = sphi 0, %s91
      %s94 = sphi 0, %s93
      %s108 = sphi 0, %s94
      %s112 = sphi 0, %s112
      %s114 = sphi 0, %s112
      %s115 = sphi 0, %s114
      %s129 = sphi 0, %s115
      %s135 = sphi 0, %s137
      %s138 = sphi 0, %s135
      %s139 = sphi 0, %s138
      %s155 = sphi 0, %s139
    $region4: #{tpu_custom_call.1} parent=1 // loop_header_branch
      %18 = sbr.rel (%p16) target = $region8
    $region5: #{tpu_custom_call.1} parent=1 // loop_body
      %s20 = ssub.s32 %s15, 1
      %s21 = ssub.s32 %s15, 2
      %s22 = sadd.s32 %s15, 1
      %s23 = ssub.s32 %s15, %s22
      %p24 = scmp.eq.s32.totalorder %s23, 0
      %s26 = sadd.s32 %s25, 1
      %s27 = scalar_select %p24, %s25, %s26
      %p30 = pneg %p24
      %p31 = scmp.eq.s32.totalorder %s15, 1
      %p32 = por %p30, %p31
      %p33 = scmp.ne.s32.totalorder %s25, %s28
      %p34 = scmp.eq.s32.totalorder %s15, 0
      %p35 = por %p33, %p34
      %p36 = scmp.ne.s32.totalorder %s25, %s28
      %p37 = scmp.eq.s32.totalorder %s20, 1
      %p38 = por %p36, %p37
      %p39 = scmp.ne.s32.totalorder %s28, %s29
      %p40 = scmp.eq.s32.totalorder %s20, 0
      %p41 = por %p39, %p40
      %p42 = scmp.ne.s32.totalorder %s28, %s29
      %p43 = scmp.eq.s32.totalorder %s21, 1
      %p44 = por %p42, %p43
      %p46 = scmp.ne.s32.totalorder %s29, %s45
      %p47 = scmp.eq.s32.totalorder %s21, 0
      %p48 = por %p46, %p47
      %s50 = sadd.s32 %s49, 1
      %p53 = scmp.eq.s32.totalorder %s15, 1
      %p54 = scmp.ne.s32.totalorder %s49, %s51
      %p55 = scmp.eq.s32.totalorder %s15, 0
      %p56 = por %p54, %p55
      %p57 = scmp.ne.s32.totalorder %s49, %s51
      %p58 = scmp.eq.s32.totalorder %s20, 1
      %p59 = por %p57, %p58
      %p60 = scmp.ne.s32.totalorder %s51, %s52
      %p61 = scmp.eq.s32.totalorder %s20, 0
      %p62 = por %p60, %p61
      %p63 = scmp.ne.s32.totalorder %s51, %s52
      %p64 = scmp.eq.s32.totalorder %s21, 1
      %p65 = por %p63, %p64
      %p67 = scmp.ne.s32.totalorder %s52, %s66
      %p68 = scmp.eq.s32.totalorder %s21, 0
      %p69 = por %p67, %p68
      %s71 = sadd.s32 %s70, 1
      %p74 = scmp.eq.s32.totalorder %s15, 1
      %p75 = scmp.ne.s32.totalorder %s70, %s72
      %p76 = scmp.eq.s32.totalorder %s15, 0
      %p77 = por %p75, %p76
      %p78 = scmp.ne.s32.totalorder %s70, %s72
      %p79 = scmp.eq.s32.totalorder %s20, 1
      %p80 = por %p78, %p79
      %p81 = scmp.ne.s32.totalorder %s72, %s73
      %p82 = scmp.eq.s32.totalorder %s20, 0
      %p83 = por %p81, %p82
      %p84 = scmp.ne.s32.totalorder %s72, %s73
      %p85 = scmp.eq.s32.totalorder %s21, 1
      %p86 = por %p84, %p85
      %p88 = scmp.ne.s32.totalorder %s73, %s87
      %p89 = scmp.eq.s32.totalorder %s21, 0
      %p90 = por %p88, %p89
      %s92 = sadd.s32 %s91, 1
      %p95 = scmp.eq.s32.totalorder %s15, 1
      %p96 = scmp.ne.s32.totalorder %s91, %s93
      %p97 = scmp.eq.s32.totalorder %s15, 0
      %p98 = por %p96, %p97
      %p99 = scmp.ne.s32.totalorder %s91, %s93
      %p100 = scmp.eq.s32.totalorder %s20, 1
      %p101 = por %p99, %p100
      %p102 = scmp.ne.s32.totalorder %s93, %s94
      %p103 = scmp.eq.s32.totalorder %s20, 0
      %p104 = por %p102, %p103
      %p105 = scmp.ne.s32.totalorder %s93, %s94
      %p106 = scmp.eq.s32.totalorder %s21, 1
      %p107 = por %p105, %p106
      %p109 = scmp.ne.s32.totalorder %s94, %s108
      %p110 = scmp.eq.s32.totalorder %s21, 0
      %p111 = por %p109, %p110
      %s113 = sadd.s32 %s112, 1
      %p116 = scmp.eq.s32.totalorder %s15, 1
      %p117 = scmp.ne.s32.totalorder %s112, %s114
      %p118 = scmp.eq.s32.totalorder %s15, 0
      %p119 = por %p117, %p118
      %p120 = scmp.ne.s32.totalorder %s112, %s114
      %p121 = scmp.eq.s32.totalorder %s20, 1
      %p122 = por %p120, %p121
      %p123 = scmp.ne.s32.totalorder %s114, %s115
      %p124 = scmp.eq.s32.totalorder %s20, 0
      %p125 = por %p123, %p124
      %p126 = scmp.ne.s32.totalorder %s114, %s115
      %p127 = scmp.eq.s32.totalorder %s21, 1
      %p128 = por %p126, %p127
      %p130 = scmp.ne.s32.totalorder %s115, %s129
      %p131 = scmp.eq.s32.totalorder %s21, 0
      %p132 = por %p130, %p131
      %s133 = ssub.s32 %s15, %s22
      %p134 = scmp.eq.s32.totalorder %s133, 0
      %s136 = sadd.s32 %s135, 1
      %s137 = scalar_select %p134, %s135, %s136
      %p140 = pneg %p134
      %p141 = scmp.eq.s32.totalorder %s15, 1
      %p142 = por %p140, %p141
      %p143 = scmp.ne.s32.totalorder %s135, %s138
      %p144 = scmp.eq.s32.totalorder %s15, 0
      %p145 = por %p143, %p144
      %p146 = scmp.ne.s32.totalorder %s135, %s138
      %p147 = scmp.eq.s32.totalorder %s20, 1
      %p148 = por %p146, %p147
      %p149 = scmp.ne.s32.totalorder %s138, %s139
      %p150 = scmp.eq.s32.totalorder %s20, 0
      %p151 = por %p149, %p150
      %p152 = scmp.ne.s32.totalorder %s138, %s139
      %p153 = scmp.eq.s32.totalorder %s21, 1
      %p154 = por %p152, %p153
      %p156 = scmp.ne.s32.totalorder %s139, %s155
      %p157 = scmp.eq.s32.totalorder %s21, 0
      %p158 = por %p156, %p157
      %p159 = scmp.le.s32.totalorder 1, %s15
      %p160 = scmp.lt.s32.totalorder %s15, 3
      %p161 = pnand %p159, %p160
      %p162 = pneg %p161
      // Predicated region
      $region9: #{tpu_custom_call.1} parent=5 // pred_check
        _
      $region10: #{tpu_custom_call.1} parent=5 // pred_check_branch
        %164 = sbr.rel (%p161) target = $region12
      $region11: #{tpu_custom_call.1} parent=5 // pred_region
        %s165 = ssub.s32 %s15, 1
        // Predicated region
        $region13: #{tpu_custom_call.1} parent=11 // pred_check
          %p166 = pneg %p62
        $region14: #{tpu_custom_call.1} parent=11 // pred_check_branch
          %168 = sbr.rel (%p166) target = $region16
        $region15: #{tpu_custom_call.1} parent=11 // pred_region
          %170 = vsyncadd [#allocation3], 0
          %s171 = sshll.u32 %s1, 4
          %s172 = int_to_ptr.hbm [resolvable:$true] %s171
          %s173 = sshll.u32 [#allocation2], 4
          %s174 = int_to_ptr.vmem [resolvable:$true] %s173
          %179 = dma.hbm_to_vmem [thread:$0]  %s172, 192, %s174, [#allocation3], 64, 64, 4
        $region16: #{tpu_custom_call.1} parent=11 // pred_fallthru
          _
        // Predicated region
        $region17: #{tpu_custom_call.1} parent=11 // pred_check
          %p180 = pneg %p83
        $region18: #{tpu_custom_call.1} parent=11 // pred_check_branch
          %182 = sbr.rel (%p180) target = $region20
        $region19: #{tpu_custom_call.1} parent=11 // pred_region
          _
        $region20: #{tpu_custom_call.1} parent=11 // pred_fallthru
          _
        // Predicated region
        $region21: #{tpu_custom_call.1} parent=11 // pred_check
          %p183 = pneg %p104
        $region22: #{tpu_custom_call.1} parent=11 // pred_check_branch
          %185 = sbr.rel (%p183) target = $region24
        $region23: #{tpu_custom_call.1} parent=11 // pred_region
          _
        $region24: #{tpu_custom_call.1} parent=11 // pred_fallthru
          _
        // Predicated region
        $region25: #{tpu_custom_call.1} parent=11 // pred_check
          %p186 = pneg %p125
        $region26: #{tpu_custom_call.1} parent=11 // pred_check_branch
          %188 = sbr.rel (%p186) target = $region28
        $region27: #{tpu_custom_call.1} parent=11 // pred_region
          _
        $region28: #{tpu_custom_call.1} parent=11 // pred_fallthru
          _
      $region12: #{tpu_custom_call.1} parent=5 // pred_fallthru
        _
      %p189 = scmp.lt.s32.totalorder %s15, 2
      // Predicated region
      $region29: #{tpu_custom_call.1} parent=5 // pred_check
        %p190 = pneg %p189
      $region30: #{tpu_custom_call.1} parent=5 // pred_check_branch
        %192 = sbr.rel (%p190) target = $region32
      $region31: #{tpu_custom_call.1} parent=5 // pred_region
        // Predicated region
        $region33: #{tpu_custom_call.1} parent=31 // pred_check
          %p193 = pneg %p35
        $region34: #{tpu_custom_call.1} parent=31 // pred_check_branch
          %195 = sbr.rel (%p193) target = $region36
        $region35: #{tpu_custom_call.1} parent=31 // pred_region
          %p196 = scmp.lt.s32.totalorder %s15, 1
          %s197 = scalar_select %p196, %s15, 1
          %s198 = smul.addr %s197, 8
          %s199 = scalar_lea.vmem %s0, %s198
        $region36: #{tpu_custom_call.1} parent=31 // pred_fallthru
          _
      $region32: #{tpu_custom_call.1} parent=5 // pred_fallthru
        _
      %p200 = scmp.le.s32.totalorder 1, %s15
      %p201 = scmp.lt.s32.totalorder %s15, 3
      %p202 = pnand %p200, %p201
      %p203 = pneg %p202
      // Predicated region
      $region37: #{tpu_custom_call.1} parent=5 // pred_check
        _
      $region38: #{tpu_custom_call.1} parent=5 // pred_check_branch
        %205 = sbr.rel (%p202) target = $region40
      $region39: #{tpu_custom_call.1} parent=5 // pred_region
        %s206 = ssub.s32 %s15, 1
        // Predicated region
        $region41: #{tpu_custom_call.1} parent=39 // pred_check
          %p207 = pneg %p62
        $region42: #{tpu_custom_call.1} parent=39 // pred_check_branch
          %209 = sbr.rel (%p207) target = $region44
        $region43: #{tpu_custom_call.1} parent=39 // pred_region
          %211 = dma.done [#allocation3], 192
        $region44: #{tpu_custom_call.1} parent=39 // pred_fallthru
          _
        %p212 = scmp.lt.s32.totalorder %s20, 1
        %s213 = scalar_select %p212, %s20, 1
        %s214 = smul.addr %s213, 8
        %s215 = scalar_lea.vmem %s0, %s214
        %p216 = pneg %p41
        %p217 = pneg %p38
        %p218 = pneg %p62
        %p219 = pneg %p59
        %p220 = pneg %p83
        %p221 = pneg %p80
        %p222 = pneg %p104
        %p223 = pneg %p101
        %p224 = pneg %p125
        %p225 = pneg %p122
        %p226 = pneg %p151
        %p227 = pneg %p148
        %s228 = sand.u32 %s138, 1
        %s229 = scalar_lea.sflag [#allocation4], %s228
        %s230 = sand.u32 %s138, 1
        %s231 = smul.addr %s230, 8
        %s232 = scalar_lea.vmem [#allocation5], %s231
        %p233 = scmp.lt.s32.totalorder %s20, 1
        %s234 = scalar_select %p233, %s20, 1
        %s235 = smul.addr %s234, 8
        %s236 = scalar_lea.vmem %s0, %s235
        %v237 = vld [vmem:[#allocation2] sm:$0xf]
        %s238 = scalar_lea.vmem [#allocation2], 4
        %v239 = vld [vmem:[%s238] sm:$0xf]
        %s240 = scalar_lea.vmem [#allocation2], 8
        %v241 = vld [vmem:[%s240] sm:$0xf]
        %v242 = vld [vmem:[%s2] sm:$0xff]
        %s243 = scalar_lea.vmem %s2, 8
        %v244 = vld [vmem:[%s243] sm:$0xff]
        %s245 = scalar_lea.vmem %s2, 16
        %v246 = vld [vmem:[%s245] sm:$0xff]
        %v247 = vld [vmem:[%s3] sm:$0x1]
        %v248 = vld [vmem:[%s4] sm:$0xff]
        %v249 = vld [vmem:[%s236] sm:$0xff]
        %v251 = vrot.slane %v249, 7
        %vm253 = vcmask 1040384
        %v254 = vsel %vm253, 0.0, %v251
        %v255 = vsel %vm253, %v251, 0.0
        %vm258 = vcmask 1046528
        %v259 = vrot.slane %v254, 1
        %v260 = vrot.slane %v255, 1
        %v261 = vsel %vm258, %v259, %v260
        %vm262 = vcmask 31744
        %v263 = vsel %vm262, %v261, 0
        %vm265 = vcmask 1043456
        %v267 = vsel %vm265, %v239, 0
        %269 = vmatpush.msra.mxu0 0.0
        %270 = vmatpush.msra.mxu0 0.0
        %271 = vmatpush.msra.mxu0 0.0
        %272 = vmatpush.msra.mxu0 0.0
        %273 = vmatpush.msra.mxu0 0.0
        %274 = vmatpush.msra.mxu0 0.0
        %275 = vmatpush.msra.mxu0 0.0
        %276 = vmatpush.msra.mxu0 0.0
        %277 = vmatpush.msra.mxu0 0.0
        %278 = vmatpush.msra.mxu0 0.0
        %279 = vmatpush.msra.mxu0 0.0
        %280 = vmatpush.msra.mxu0 0.0
        %281 = vmatpush.msra.mxu0 0.0
        %282 = vmatpush.msra.mxu0 0.0
        %283 = vmatpush.msra.mxu0 0.0
        %284 = vmatpush.msra.mxu0 %v267
        %285 = vmatmul.f32.gmra.mxu0 %v263
        %v286 = vpop.f32.mrf.mxu0
        %v287 = vadd.f32 0.0, %v286
        %288 = vdwg.mxu0
        %v289 = vsel %vm262, %v254, 0
        %v292 = vsel %vm265, %v237, 0
        %294 = vmatpush.msra.mxu0 0.0
        %295 = vmatpush.msra.mxu0 0.0
        %296 = vmatpush.msra.mxu0 0.0
        %297 = vmatpush.msra.mxu0 0.0
        %298 = vmatpush.msra.mxu0 0.0
        %299 = vmatpush.msra.mxu0 0.0
        %300 = vmatpush.msra.mxu0 0.0
        %301 = vmatpush.msra.mxu0 0.0
        %302 = vmatpush.msra.mxu0 0.0
        %303 = vmatpush.msra.mxu0 0.0
        %304 = vmatpush.msra.mxu0 0.0
        %305 = vmatpush.msra.mxu0 0.0
        %306 = vmatpush.msra.mxu0 0.0
        %307 = vmatpush.msra.mxu0 0.0
        %308 = vmatpush.msra.mxu0 0.0
        %309 = vmatpush.msra.mxu0 %v292
        %310 = vmatmul.f32.gmra.mxu0 %v289
        %v311 = vpop.f32.mrf.mxu0
        %v312 = vadd.f32 %v287, %v311
        %313 = vdwg.mxu0
        %vm314 = vcmask 1045504
        %v315 = vrot.slane %v254, 2
        %v316 = vrot.slane %v255, 2
        %v317 = vsel %vm314, %v315, %v316
        %v318 = vsel %vm262, %v317, 0
        %v321 = vsel %vm265, %v241, 0
        %323 = vmatpush.msra.mxu0 0.0
        %324 = vmatpush.msra.mxu0 0.0
        %325 = vmatpush.msra.mxu0 0.0
        %326 = vmatpush.msra.mxu0 0.0
        %327 = vmatpush.msra.mxu0 0.0
        %328 = vmatpush.msra.mxu0 0.0
        %329 = vmatpush.msra.mxu0 0.0
        %330 = vmatpush.msra.mxu0 0.0
        %331 = vmatpush.msra.mxu0 0.0
        %332 = vmatpush.msra.mxu0 0.0
        %333 = vmatpush.msra.mxu0 0.0
        %334 = vmatpush.msra.mxu0 0.0
        %335 = vmatpush.msra.mxu0 0.0
        %336 = vmatpush.msra.mxu0 0.0
        %337 = vmatpush.msra.mxu0 0.0
        %338 = vmatpush.msra.mxu0 %v321
        %339 = vmatmul.f32.gmra.mxu0 %v318
        %v340 = vpop.f32.mrf.mxu0
        %v341 = vadd.f32 0.0, %v340
        %342 = vdwg.mxu0
        %v343 = vadd.f32 %v312, %v341
        %v345 = vperm.slane %v247, 0
        %v347 = vadd.f32 %v343, %v345
        %v348 = vmax.f32 %v347, 0.0
        %v350 = vrot.slane %v348, 7
        %v352 = vsel %vm253, 0.0, %v350
        %v353 = vsel %vm253, %v350, 0.0
        %v356 = vrot.slane %v352, 1
        %v357 = vrot.slane %v353, 1
        %v358 = vsel %vm258, %v356, %v357
        %vm359 = vcmask 64512
        %v361 = vsel %vm359, %v244, 0
        %v363 = vsel %vm359, %v358, 0
        %365 = vmatpush.xpose.msra.mxu0 0.0
        %366 = vmatpush.xpose.msra.mxu0 0.0
        %367 = vmatpush.xpose.msra.mxu0 0.0
        %368 = vmatpush.xpose.msra.mxu0 0.0
        %369 = vmatpush.xpose.msra.mxu0 0.0
        %370 = vmatpush.xpose.msra.mxu0 0.0
        %371 = vmatpush.xpose.msra.mxu0 0.0
        %372 = vmatpush.xpose.msra.mxu0 0.0
        %373 = vmatpush.xpose.msra.mxu0 0.0
        %374 = vmatpush.xpose.msra.mxu0 0.0
        %375 = vmatpush.xpose.msra.mxu0 0.0
        %376 = vmatpush.xpose.msra.mxu0 0.0
        %377 = vmatpush.xpose.msra.mxu0 0.0
        %378 = vmatpush.xpose.msra.mxu0 0.0
        %379 = vmatpush.xpose.msra.mxu0 0.0
        %380 = vmatpush.xpose.msra.mxu0 %v363
        %381 = vmatmul.f32.gmra.mxu0 %v361
        %v382 = vpop.f32.mrf.mxu0
        %v383 = vadd.f32 0.0, %v382
        %384 = vdwg.mxu0
        %v386 = vsel %vm359, %v242, 0
        %v388 = vsel %vm359, %v352, 0
        %390 = vmatpush.xpose.msra.mxu0 0.0
        %391 = vmatpush.xpose.msra.mxu0 0.0
        %392 = vmatpush.xpose.msra.mxu0 0.0
        %393 = vmatpush.xpose.msra.mxu0 0.0
        %394 = vmatpush.xpose.msra.mxu0 0.0
        %395 = vmatpush.xpose.msra.mxu0 0.0
        %396 = vmatpush.xpose.msra.mxu0 0.0
        %397 = vmatpush.xpose.msra.mxu0 0.0
        %398 = vmatpush.xpose.msra.mxu0 0.0
        %399 = vmatpush.xpose.msra.mxu0 0.0
        %400 = vmatpush.xpose.msra.mxu0 0.0
        %401 = vmatpush.xpose.msra.mxu0 0.0
        %402 = vmatpush.xpose.msra.mxu0 0.0
        %403 = vmatpush.xpose.msra.mxu0 0.0
        %404 = vmatpush.xpose.msra.mxu0 0.0
        %405 = vmatpush.xpose.msra.mxu0 %v388
        %406 = vmatmul.f32.gmra.mxu0 %v386
        %v407 = vpop.f32.mrf.mxu0
        %v408 = vadd.f32 %v383, %v407
        %409 = vdwg.mxu0
        %v410 = vrot.slane %v352, 2
        %v411 = vrot.slane %v353, 2
        %v412 = vsel %vm314, %v410, %v411
        %v414 = vsel %vm359, %v246, 0
        %v416 = vsel %vm359, %v412, 0
        %418 = vmatpush.xpose.msra.mxu0 0.0
        %419 = vmatpush.xpose.msra.mxu0 0.0
        %420 = vmatpush.xpose.msra.mxu0 0.0
        %421 = vmatpush.xpose.msra.mxu0 0.0
        %422 = vmatpush.xpose.msra.mxu0 0.0
        %423 = vmatpush.xpose.msra.mxu0 0.0
        %424 = vmatpush.xpose.msra.mxu0 0.0
        %425 = vmatpush.xpose.msra.mxu0 0.0
        %426 = vmatpush.xpose.msra.mxu0 0.0
        %427 = vmatpush.xpose.msra.mxu0 0.0
        %428 = vmatpush.xpose.msra.mxu0 0.0
        %429 = vmatpush.xpose.msra.mxu0 0.0
        %430 = vmatpush.xpose.msra.mxu0 0.0
        %431 = vmatpush.xpose.msra.mxu0 0.0
        %432 = vmatpush.xpose.msra.mxu0 0.0
        %433 = vmatpush.xpose.msra.mxu0 %v416
        %434 = vmatmul.f32.gmra.mxu0 %v414
        %v435 = vpop.f32.mrf.mxu0
        %v436 = vadd.f32 0.0, %v435
        %437 = vdwg.mxu0
        %v438 = vadd.f32 %v408, %v436
        %440 = vset.pattern.permute.xlu0 0
        %441 = vperm.xlu0 %440, %v248
        %v442 = vpop.permute.xlu0 %441
        %v444 = vadd.f32 %v438, %v442
        %v445 = vmax.f32 %v444, 0.0
        %446 = vst.msk [vmem:[%s232] sm:$0xff] %vm359, %v445
        %s447 = sand.u32 %s138, 1
        %s448 = scalar_lea.sflag [#allocation4], %s447
        %s449 = sand.u32 %s138, 1
        %s450 = smul.addr %s449, 8
        %s451 = scalar_lea.vmem [#allocation5], %s450
        // Predicated region
        $region45: #{tpu_custom_call.1} parent=39 // pred_check
          %p452 = pneg %p148
        $region46: #{tpu_custom_call.1} parent=39 // pred_check_branch
          %454 = sbr.rel (%p452) target = $region48
        $region47: #{tpu_custom_call.1} parent=39 // pred_region
          %456 = vsyncadd %s448, 0
          %s457 = smul.addr %s20, 8
          %s458 = scalar_lea.hbm %s5, %s457
          %s460 = sshll.u32 %s451, 4
          %s461 = int_to_ptr.vmem [resolvable:$true] %s460
          %s462 = sshll.u32 %s458, 4
          %s463 = int_to_ptr.hbm [resolvable:$true] %s462
          %465 = dma.vmem_to_hbm [thread:$0]  %s461, 128, %s463, %s448
        $region48: #{tpu_custom_call.1} parent=39 // pred_fallthru
          _
      $region40: #{tpu_custom_call.1} parent=5 // pred_fallthru
        _
      %p466 = scmp.le.s32.totalorder 2, %s15
      // Predicated region
      $region49: #{tpu_custom_call.1} parent=5 // pred_check
        %p467 = pneg %p466
      $region50: #{tpu_custom_call.1} parent=5 // pred_check_branch
        %469 = sbr.rel (%p467) target = $region52
      $region51: #{tpu_custom_call.1} parent=5 // pred_region
        %s470 = ssub.s32 %s15, 2
        // Predicated region
        $region53: #{tpu_custom_call.1} parent=51 // pred_check
          %p471 = pneg %p154
        $region54: #{tpu_custom_call.1} parent=51 // pred_check_branch
          %473 = sbr.rel (%p471) target = $region56
        $region55: #{tpu_custom_call.1} parent=51 // pred_region
          %s474 = sand.u32 %s139, 1
          %s475 = scalar_lea.sflag [#allocation4], %s474
          %s476 = sand.u32 %s139, 1
          %s477 = smul.addr %s476, 8
          %s478 = scalar_lea.vmem [#allocation5], %s477
          %480 = dma.done %s475, 128
        $region56: #{tpu_custom_call.1} parent=51 // pred_fallthru
          _
      $region52: #{tpu_custom_call.1} parent=5 // pred_fallthru
        _
    $region6: #{tpu_custom_call.1} parent=1 // loop_footer
      %s19 = sadd.s32 1, %s15
    $region7: #{tpu_custom_call.1} parent=1 // loop_footer_branch
      %14 = sbr.rel target = $region3
    $region8: #{tpu_custom_call.1} parent=1 // loop_exit
      _
    %481 = vsyncpa [#allocation3], 1
    %s482 = scalar_lea.sflag [#allocation3], 1
    %483 = vsyncpa %s482, 1
    %484 = vsyncpa [#allocation4], 1
    %s485 = scalar_lea.sflag [#allocation4], 1
    %486 = vsyncpa %s485, 1

</llo_original>
